<compile_context>
chip_gen: v5e
topology: v5e:2x2
jax: 0.10.0
libtpu: 0.0.40
codegen_flags: <defaults>
</compile_context>

<pallas_src>
import jax
import jax.numpy as jnp
import numpy as np
from jax.experimental import pallas as pl
from jax.experimental.pallas import tpu as pltpu


def _chip_budgets():
    """(vmem_limit_bytes, tile_budget_bytes, max_tile_rows) sized per TPU generation."""
    try:
        cap = int(getattr(pltpu.get_tpu_info(), "vmem_capacity_bytes", 0) or 0)
    except Exception:
        cap = 0
    if cap >= 100 * 1024 * 1024:
        # v5e / v6e: 128 MiB physical VMEM -> big tiles to amortize per-step overhead.
        return 96 * 1024 * 1024, 72 * 1024 * 1024, 8192
    # v7x (64 MiB physical / 32 MiB scoped default) or unknown: stay conservative.
    return 48 * 1024 * 1024, 36 * 1024 * 1024, 4096


def _pick_tile_rows(total_units, wp, per_row_bytes, max_rows, budget):
    """Largest t | total_units with (t*wp) % 8 == 0, t*wp <= max_rows and bytes <= budget."""
    best = None
    for t in range(1, total_units + 1):
        if total_units % t:
            continue
        m = t * wp
        if m % 8 or m > max_rows or m * per_row_bytes > budget:
            continue
        best = t
    if best is None:
        raise ValueError(
            "no valid row tile: need t dividing %d with (t*%d) %% 8 == 0 within the VMEM budget"
            % (total_units, wp))
    return best


def _conv_tile(x, w_ref, m):
    """3x3 conv on a row tile.

    kh is pre-folded into the contraction dim of x / w; the 3 kw taps are full-tile MXU
    matmuls whose f32 results are sublane-rolled by -kw (pltpu.roll, XLU) before a single
    register accumulation — no misaligned slices, no read-modify-writes on the output ref.
    The <=2 wrapped rows fall on the horizontal-pad rows (masked / discarded downstream).
    """
    acc = jnp.dot(x, w_ref[0], preferred_element_type=jnp.float32)
    for kw in (1, 2):
        tap = jnp.dot(x, w_ref[kw], preferred_element_type=jnp.float32)
        acc = acc + pltpu.roll(tap, shift=m - kw, axis=0)   # rolled[p] = tap[p + kw]
    return acc


def _make_stats_kernel(m):
    """Pass 1: conv tile + masked per-channel sum / sum-of-squares (per-image partials)."""

    def kernel(x_ref, w_ref, mask_ref, sum_ref, sumsq_ref):
        conv = _conv_tile(x_ref[...], w_ref, m)              # (m, C_out) f32
        masked = conv * mask_ref[...]                        # zero the horizontal-pad rows

        @pl.when(pl.program_id(1) == 0)
        def _init():
            sum_ref[...] = jnp.zeros_like(sum_ref)
            sumsq_ref[...] = jnp.zeros_like(sumsq_ref)

        sum_ref[...] += jnp.sum(masked, axis=0, keepdims=True)[None]
        sumsq_ref[...] += jnp.sum(masked * conv, axis=0, keepdims=True)[None]

    return kernel


def _make_fused_kernel(m):
    """Pass 2: recompute the conv tile, fused BN-affine normalize + PReLU, single store."""

    def kernel(x_ref, w_ref, scale_ref, shift_ref, alpha_ref, o_ref):
        conv = _conv_tile(x_ref[...], w_ref, m)
        y = conv * scale_ref[...] + shift_ref[...]
        a = alpha_ref[0, 0]
        o_ref[...] = jnp.where(y >= 0.0, y, a * y)

    return kernel


def conv_layer_forward(x_nchw, weight, bias, gamma, beta, alpha,
                       *, kernel_size=3, stride=1, padding=1):
    """Forward of ConvLayer: Conv2d(3x3,s1,p1) -> BatchNorm2d(train) -> PReLU.  NCHW in/out."""
    assert kernel_size == 3 and stride == 1 and padding == 1
    del bias  # exact cancellation: training-mode BN subtracts the batch mean of (conv + bias)
    # TODO(synk): BatchNorm running_mean/running_var buffer updates (training-time module
    # state side effect) are not produced; only the forward activation is returned.

    N, C_in, H, W = x_nchw.shape
    C_out = weight.shape[0]
    Wp = W + 2                      # padded width: 2 throwaway columns per image row
    K3 = 3 * C_in                   # kh folded into the MXU contraction dim
    R2 = N * H * Wp                 # rows of the padded-width layout
    r_valid = N * H * W             # real pixels (BN statistics population)

    vmem_limit, tile_budget, max_rows = _chip_budgets()

    # NHWC + spatial zero padding; three kh-shifted views concatenated on channels -> one
    # (N*H*Wp, 3*C_in) bf16 operand (same HBM bytes as three separate shifted copies).
    x_nhwc = jnp.transpose(x_nchw, (0, 2, 3, 1))
    x_pad = jnp.pad(x_nhwc, ((0, 0), (1, 1), (1, 1), (0, 0))).astype(jnp.bfloat16)
    x3 = jnp.concatenate([x_pad[:, kh:kh + H] for kh in range(3)], axis=-1)
    x3 = x3.reshape(R2, K3)

    # Weights: (C_out, C_in, 3, 3) -> (kw, kh*C_in + i, C_out), bf16.  No channel padding:
    # channel blocks use the full extent, lane padding is left to the compiler.
    w3 = jnp.transpose(weight, (3, 2, 1, 0)).reshape(3, K3, C_out).astype(jnp.bfloat16)

    # ---------------- pass 1: conv + per-image partial BN statistics ----------------
    per_row1 = 4 * K3 * 2 + 4 * C_out * 4     # x (double-buffered) + f32 conv/mask temps
    th1 = _pick_tile_rows(H, Wp, per_row1, max_rows, tile_budget)
    m1 = th1 * Wp
    n_th = H // th1

    col1 = jnp.arange(m1, dtype=jnp.int32) % Wp
    mask1 = (col1 < W).astype(jnp.float32).reshape(m1, 1)   # 0 on horizontal-pad rows

    part_sum, part_sumsq = pl.pallas_call(
        _make_stats_kernel(m1),
        grid=(N, n_th),
        in_specs=[
            pl.BlockSpec((m1, K3), lambda n, i: (n * n_th + i, 0)),
            pl.BlockSpec((3, K3, C_out), lambda n, i: (0, 0, 0)),
            pl.BlockSpec((m1, 1), lambda n, i: (0, 0)),
        ],
        out_specs=(
            pl.BlockSpec((1, 1, C_out), lambda n, i: (n, 0, 0)),
            pl.BlockSpec((1, 1, C_out), lambda n, i: (n, 0, 0)),
        ),
        out_shape=(
            jax.ShapeDtypeStruct((N, 1, C_out), jnp.float32),
            jax.ShapeDtypeStruct((N, 1, C_out), jnp.float32),
        ),
        compiler_params=pltpu.CompilerParams(
            dimension_semantics=("parallel", "arbitrary"),   # per-image partials -> v7x megacore
            vmem_limit_bytes=vmem_limit),
    )(x3, w3, mask1)

    # Tiny finalize in plain JAX: fold mean/var/gamma/beta into per-channel scale & shift.
    # NOTE: variance via E[x^2]-E[x]^2 with f32 sums; adequate at bf16-MXU precision here.
    s = jnp.sum(part_sum, axis=(0, 1)).reshape(1, C_out)
    ss = jnp.sum(part_sumsq, axis=(0, 1)).reshape(1, C_out)
    mean = s / r_valid
    var = ss / r_valid - mean * mean                         # biased (training-mode) variance
    scale = gamma.astype(jnp.float32).reshape(1, C_out) * jax.lax.rsqrt(var + 1e-5)
    shift = beta.astype(jnp.float32).reshape(1, C_out) - mean * scale

    # ---------------- pass 2: fused conv recompute + normalize + PReLU ----------------
    per_row2 = 4 * K3 * 2 + 6 * C_out * 4     # x + out (both double-buffered) + f32 temps
    t2 = _pick_tile_rows(N * H, Wp, per_row2, max_rows, tile_budget)
    m2 = t2 * Wp

    y_flat = pl.pallas_call(
        _make_fused_kernel(m2),
        grid=(R2 // m2,),
        in_specs=[
            pl.BlockSpec((m2, K3), lambda i: (i, 0)),
            pl.BlockSpec((3, K3, C_out), lambda i: (0, 0, 0)),
            pl.BlockSpec((1, C_out), lambda i: (0, 0)),
            pl.BlockSpec((1, C_out), lambda i: (0, 0)),
            pl.BlockSpec(memory_space=pltpu.MemorySpace.SMEM),
        ],
        out_specs=pl.BlockSpec((m2, C_out), lambda i: (i, 0)),
        out_shape=jax.ShapeDtypeStruct((R2, C_out), jnp.float32),
        compiler_params=pltpu.CompilerParams(
            dimension_semantics=("parallel",),
            vmem_limit_bytes=vmem_limit),
    )(x3, w3, scale, shift, alpha.reshape(1, 1).astype(jnp.float32))

    y = y_flat.reshape(N, H, Wp, C_out)[:, :, :W, :]
    return jnp.transpose(y, (0, 3, 1, 2))  # back to NCHW


def reference_forward(x, weight, bias, gamma, beta, alpha):
    """Pure-JAX reference matching PyTorch Conv2d + BatchNorm2d(train) + PReLU."""
    conv = jax.lax.conv_general_dilated(
        x, weight, window_strides=(1, 1), padding=((1, 1), (1, 1)),
        dimension_numbers=("NCHW", "OIHW", "NCHW"),
    ) + bias.reshape(1, -1, 1, 1)
    mean = conv.mean(axis=(0, 2, 3), keepdims=True)
    var = ((conv - mean) ** 2).mean(axis=(0, 2, 3), keepdims=True)
    y = (conv - mean) * jax.lax.rsqrt(var + 1e-5)
    y = y * gamma.reshape(1, -1, 1, 1) + beta.reshape(1, -1, 1, 1)
    return jnp.where(y >= 0, y, alpha * y)


if __name__ == "__main__":
    key = jax.random.PRNGKey(0)
    k_x, k_w, k_b = jax.random.split(key, 3)

    N, C_in, H, W = 2, 4, 16, 16
    C_out, K = 8, 3

    x = jax.random.normal(k_x, (N, C_in, H, W), dtype=jnp.float32)
    # Deterministic synthetic parameters (PyTorch init shapes, not a checkpoint).
    weight = jax.random.normal(k_w, (C_out, C_in, K, K), dtype=jnp.float32) * 0.1
    bias = jax.random.normal(k_b, (C_out,), dtype=jnp.float32) * 0.1
    gamma = jnp.ones((C_out,), dtype=jnp.float32)     # BatchNorm2d weight init
    beta = jnp.zeros((C_out,), dtype=jnp.float32)     # BatchNorm2d bias init
    alpha = jnp.asarray(0.25, dtype=jnp.float32)      # nn.PReLU() default

    out = jax.block_until_ready(conv_layer_forward(x, weight, bias, gamma, beta, alpha))
    ref = jax.block_until_ready(reference_forward(x, weight, bias, gamma, beta, alpha))
    np.testing.assert_allclose(np.asarray(out), np.asarray(ref), rtol=1e-2, atol=1e-2)

    print("KERNEL_OK")
</pallas_src>

<mosaic_0001>
module attributes {stable_mosaic.version = 11 : i64} {
  func.func @kernel(%arg0: i32, %arg1: i32, %arg2: memref<288x12xbf16, #tpu.memory_space<vmem>>, %arg3: memref<3x12x8xbf16, #tpu.memory_space<vmem>>, %arg4: memref<288x1xf32, #tpu.memory_space<vmem>>, %arg5: memref<1x1x8xf32, #tpu.memory_space<vmem>>, %arg6: memref<1x1x8xf32, #tpu.memory_space<vmem>>) attributes {dimension_semantics = [#tpu.dimension_semantics<parallel>, #tpu.dimension_semantics<arbitrary>], iteration_bounds = array<i64: 2, 1>, scalar_prefetch = 0 : i64, scratch_operands = 0 : i64, tpu.core_type = #tpu.core_type<tc>, window_params = [{transform_indices = @transform_0, window_bounds = array<i64: 288, 12>}, {pipeline_mode = #tpu.pipeline_mode<synchronous>, transform_indices = @transform_1, window_bounds = array<i64: 3, 12, 8>}, {pipeline_mode = #tpu.pipeline_mode<synchronous>, transform_indices = @transform_2, window_bounds = array<i64: 288, 1>}, {transform_indices = @transform_3, window_bounds = array<i64: 1, 1, 8>}, {transform_indices = @transform_4, window_bounds = array<i64: 1, 1, 8>}]} {
    %c0 = arith.constant 0 : index
    %c0_0 = arith.constant 0 : index
    %0 = vector.load %arg2[%c0, %c0_0] : memref<288x12xbf16, #tpu.memory_space<vmem>>, vector<288x12xbf16>
    %c0_1 = arith.constant 0 : index
    %c0_2 = arith.constant 0 : index
    %c0_3 = arith.constant 0 : index
    %1 = vector.load %arg3[%c0_1, %c0_2, %c0_3] : memref<3x12x8xbf16, #tpu.memory_space<vmem>>, vector<1x12x8xbf16>
    %2 = vector.shape_cast %1 : vector<1x12x8xbf16> to vector<12x8xbf16>
    %cst = arith.constant dense<0.000000e+00> : vector<288x8xf32>
    %3 = tpu.matmul %0, %2, %cst {dimension_numbers = #tpu.dot_dimension_numbers<[1], [0], [0], [1], [0, 0, 1, 1], [], []>} : vector<288x12xbf16>, vector<12x8xbf16>, vector<288x8xf32> -> vector<288x8xf32>
    %c1 = arith.constant 1 : index
    %c0_4 = arith.constant 0 : index
    %c0_5 = arith.constant 0 : index
    %4 = vector.load %arg3[%c1, %c0_4, %c0_5] : memref<3x12x8xbf16, #tpu.memory_space<vmem>>, vector<1x12x8xbf16>
    %5 = vector.shape_cast %4 : vector<1x12x8xbf16> to vector<12x8xbf16>
    %cst_6 = arith.constant dense<0.000000e+00> : vector<288x8xf32>
    %6 = tpu.matmul %0, %5, %cst_6 {dimension_numbers = #tpu.dot_dimension_numbers<[1], [0], [0], [1], [0, 0, 1, 1], [], []>} : vector<288x12xbf16>, vector<12x8xbf16>, vector<288x8xf32> -> vector<288x8xf32>
    %c287_i32 = arith.constant 287 : i32
    %7 = tpu.dynamic_rotate %6 by %c287_i32 dim 0 : vector<288x8xf32>, i32 -> vector<288x8xf32>
    %8 = arith.addf %3, %7 : vector<288x8xf32>
    %c2 = arith.constant 2 : index
    %c0_7 = arith.constant 0 : index
    %c0_8 = arith.constant 0 : index
    %9 = vector.load %arg3[%c2, %c0_7, %c0_8] : memref<3x12x8xbf16, #tpu.memory_space<vmem>>, vector<1x12x8xbf16>
    %10 = vector.shape_cast %9 : vector<1x12x8xbf16> to vector<12x8xbf16>
    %cst_9 = arith.constant dense<0.000000e+00> : vector<288x8xf32>
    %11 = tpu.matmul %0, %10, %cst_9 {dimension_numbers = #tpu.dot_dimension_numbers<[1], [0], [0], [1], [0, 0, 1, 1], [], []>} : vector<288x12xbf16>, vector<12x8xbf16>, vector<288x8xf32> -> vector<288x8xf32>
    %c286_i32 = arith.constant 286 : i32
    %12 = tpu.dynamic_rotate %11 by %c286_i32 dim 0 : vector<288x8xf32>, i32 -> vector<288x8xf32>
    %13 = arith.addf %8, %12 : vector<288x8xf32>
    %c0_10 = arith.constant 0 : index
    %c0_11 = arith.constant 0 : index
    %14 = vector.load %arg4[%c0_10, %c0_11] : memref<288x1xf32, #tpu.memory_space<vmem>>, vector<288x1xf32>
    %15 = vector.broadcast %14 : vector<288x1xf32> to vector<288x8xf32>
    %16 = arith.mulf %13, %15 : vector<288x8xf32>
    %c0_i32 = arith.constant 0 : i32
    %17 = arith.cmpi eq, %arg1, %c0_i32 : i32
    %18 = arith.extui %17 : i1 to i32
    %c0_i32_12 = arith.constant 0 : i32
    %19 = arith.cmpi ne, %18, %c0_i32_12 : i32
    scf.if %19 {
      %cst_27 = arith.constant 0.000000e+00 : f32
      %33 = vector.broadcast %cst_27 : f32 to vector<1x1x8xf32>
      %c0_28 = arith.constant 0 : index
      %c0_29 = arith.constant 0 : index
      %c0_30 = arith.constant 0 : index
      %34 = vector.load %arg5[%c0_28, %c0_29, %c0_30] : memref<1x1x8xf32, #tpu.memory_space<vmem>>, vector<1x1x8xf32>
      tpu.vector_store %arg5[%c0_28, %c0_29, %c0_30], %33 {strides = array<i32>} : memref<1x1x8xf32, #tpu.memory_space<vmem>>, vector<1x1x8xf32>,
      %cst_31 = arith.constant 0.000000e+00 : f32
      %35 = vector.broadcast %cst_31 : f32 to vector<1x1x8xf32>
      %c0_32 = arith.constant 0 : index
      %c0_33 = arith.constant 0 : index
      %c0_34 = arith.constant 0 : index
      %36 = vector.load %arg6[%c0_32, %c0_33, %c0_34] : memref<1x1x8xf32, #tpu.memory_space<vmem>>, vector<1x1x8xf32>
      tpu.vector_store %arg6[%c0_32, %c0_33, %c0_34], %35 {strides = array<i32>} : memref<1x1x8xf32, #tpu.memory_space<vmem>>, vector<1x1x8xf32>,
    } else {
    }
    %c0_13 = arith.constant 0 : index
    %c0_14 = arith.constant 0 : index
    %c0_15 = arith.constant 0 : index
    %20 = vector.load %arg5[%c0_13, %c0_14, %c0_15] : memref<1x1x8xf32, #tpu.memory_space<vmem>>, vector<1x1x8xf32>
    %cst_16 = arith.constant dense<0.000000e+00> : vector<8xf32>
    %21 = vector.multi_reduction <add>, %16, %cst_16 [0] : vector<288x8xf32> to vector<8xf32>
    %22 = vector.shape_cast %21 : vector<8xf32> to vector<1x8xf32>
    %23 = vector.shape_cast %22 : vector<1x8xf32> to vector<1x1x8xf32>
    %24 = arith.addf %20, %23 : vector<1x1x8xf32>
    %c0_17 = arith.constant 0 : index
    %c0_18 = arith.constant 0 : index
    %c0_19 = arith.constant 0 : index
    %25 = vector.load %arg5[%c0_17, %c0_18, %c0_19] : memref<1x1x8xf32, #tpu.memory_space<vmem>>, vector<1x1x8xf32>
    tpu.vector_store %arg5[%c0_17, %c0_18, %c0_19], %24 {strides = array<i32>} : memref<1x1x8xf32, #tpu.memory_space<vmem>>, vector<1x1x8xf32>,
    %c0_20 = arith.constant 0 : index
    %c0_21 = arith.constant 0 : index
    %c0_22 = arith.constant 0 : index
    %26 = vector.load %arg6[%c0_20, %c0_21, %c0_22] : memref<1x1x8xf32, #tpu.memory_space<vmem>>, vector<1x1x8xf32>
    %27 = arith.mulf %16, %13 : vector<288x8xf32>
    %cst_23 = arith.constant dense<0.000000e+00> : vector<8xf32>
    %28 = vector.multi_reduction <add>, %27, %cst_23 [0] : vector<288x8xf32> to vector<8xf32>
    %29 = vector.shape_cast %28 : vector<8xf32> to vector<1x8xf32>
    %30 = vector.shape_cast %29 : vector<1x8xf32> to vector<1x1x8xf32>
    %31 = arith.addf %26, %30 : vector<1x1x8xf32>
    %c0_24 = arith.constant 0 : index
    %c0_25 = arith.constant 0 : index
    %c0_26 = arith.constant 0 : index
    %32 = vector.load %arg6[%c0_24, %c0_25, %c0_26] : memref<1x1x8xf32, #tpu.memory_space<vmem>>, vector<1x1x8xf32>
    tpu.vector_store %arg6[%c0_24, %c0_25, %c0_26], %31 {strides = array<i32>} : memref<1x1x8xf32, #tpu.memory_space<vmem>>, vector<1x1x8xf32>,
    return
  }
  func.func @transform_0(%arg0: i32, %arg1: i32) -> (i32, i32) {
    %c1_i32 = arith.constant 1 : i32
    %0 = arith.muli %arg0, %c1_i32 : i32
    %1 = arith.addi %0, %arg1 : i32
    %c0_i32 = arith.constant 0 : i32
    %c0_i32_0 = arith.constant 0 : i32
    return %1, %c0_i32 : i32, i32
  }
  func.func @transform_1(%arg0: i32, %arg1: i32) -> (i32, i32, i32) {
    %c0_i32 = arith.constant 0 : i32
    %c0_i32_0 = arith.constant 0 : i32
    %c0_i32_1 = arith.constant 0 : i32
    %c0_i32_2 = arith.constant 0 : i32
    return %c0_i32, %c0_i32_0, %c0_i32_1 : i32, i32, i32
  }
  func.func @transform_2(%arg0: i32, %arg1: i32) -> (i32, i32) {
    %c0_i32 = arith.constant 0 : i32
    %c0_i32_0 = arith.constant 0 : i32
    %c0_i32_1 = arith.constant 0 : i32
    return %c0_i32, %c0_i32_0 : i32, i32
  }
  func.func @transform_3(%arg0: i32, %arg1: i32) -> (i32, i32, i32) {
    %c0_i32 = arith.constant 0 : i32
    %c0_i32_0 = arith.constant 0 : i32
    %c0_i32_1 = arith.constant 0 : i32
    return %arg0, %c0_i32, %c0_i32_0 : i32, i32, i32
  }
  func.func @transform_4(%arg0: i32, %arg1: i32) -> (i32, i32, i32) {
    %c0_i32 = arith.constant 0 : i32
    %c0_i32_0 = arith.constant 0 : i32
    %c0_i32_1 = arith.constant 0 : i32
    return %arg0, %c0_i32, %c0_i32_0 : i32, i32, i32
  }
}

</mosaic_0001>

<llo_original>
// kernel: tpu_custom_call.1
$region0: #{tpu_custom_call.1}
  #allocation0 [shape = 'u32[]', space=smem, size = 0x4, offset = 0x4, fixed_abs, tag = 'smem constant byte address 0x4 - core index']
  #allocation1 [shape = 'u32[72,128]{1,0:T(1,128)}', space=vmem, size = 0x9000, scoped, tag = 'internal scratch']
  %s0 = inlined_call_operand.vmem [shape: bf16[576,12], index: 0, kind: input, shape index: {}]
  %s1 = inlined_call_operand.vmem [shape: bf16[3,12,8], index: 1, kind: input, shape index: {}]
  %s2 = inlined_call_operand.vmem [shape: f32[288,1], index: 2, kind: input, shape index: {}]
  %s3 = inlined_call_operand.hbm [shape: f32[2,1,8], index: 3, kind: output, shape index: {0}]
  %s4 = inlined_call_operand.hbm [shape: f32[2,1,8], index: 4, kind: output, shape index: {1}]
  %5 = xla_tuple %s3, %s4
  %s6 = sld [smem:[#allocation0]]
  $region57: #{tpu_custom_call.1} parent=0
    _
  %s8 = ssub.s32 1, %s6
  %s9 = scalar_select 0, %s8, %s6
  $region1: #{tpu_custom_call.1} parent=0
    #allocation2 [shape = 'u8[1024]{0}', space=vmem, size = 0x400, scoped, tag = 'output window, operand 0']
    #allocation3 [shape = 's32[2]{0}', space=sflag, size = 0x8, scoped, tag = 'scoped memory for tpu_custom_call.1']
    #allocation4 [shape = 'u8[1024]{0}', space=vmem, size = 0x400, scoped, tag = 'output window, operand 1']
    #allocation5 [shape = 's32[2]{0}', space=sflag, size = 0x8, scoped, tag = 'scoped memory for tpu_custom_call.1']
    %10 = vsyncpa [#allocation3], 0
    %s11 = scalar_lea.sflag [#allocation3], 1
    %12 = vsyncpa %s11, 0
    %13 = vsyncpa [#allocation5], 0
    %s14 = scalar_lea.sflag [#allocation5], 1
    %15 = vsyncpa %s14, 0
    loop: start=0, step=1, limit=4
    $region2: #{tpu_custom_call.1} parent=1 // loop_pre_header
      _
    $region3: #{tpu_custom_call.1} parent=1 // loop_header
      %s17 = sphi 0, %s21
      %p18 = scmp.ge.s32.totalorder %s17, 4
      %s24 = sphi 0, %s36
      %s25 = sphi 0, %s32
      %s26 = sphi 0, %s24
      %s27 = sphi 0, %s25
      %s28 = sphi 0, %s26
      %s29 = sphi 0, %s27
      %s41 = sphi 0, %s43
      %s44 = sphi 0, %s41
      %s45 = sphi 0, %s44
      %s61 = sphi 0, %s45
      %s65 = sphi 0, %s65
      %s67 = sphi 0, %s65
      %s68 = sphi 0, %s67
      %s82 = sphi 0, %s68
      %s86 = sphi 0, %s86
      %s88 = sphi 0, %s86
      %s89 = sphi 0, %s88
      %s103 = sphi 0, %s89
      %s109 = sphi 0, %s111
      %s112 = sphi 0, %s109
      %s113 = sphi 0, %s112
      %s129 = sphi 0, %s113
      %s135 = sphi 0, %s137
      %s138 = sphi 0, %s135
      %s139 = sphi 0, %s138
      %s155 = sphi 0, %s139
    $region4: #{tpu_custom_call.1} parent=1 // loop_header_branch
      %20 = sbr.rel (%p18) target = $region8
    $region5: #{tpu_custom_call.1} parent=1 // loop_body
      %s22 = ssub.s32 %s17, 1
      %s23 = ssub.s32 %s17, 2
      %s30 = sadd.s32 1, %s25
      %p31 = scmp.ge.s32.totalorder %s30, 1
      %s32 = scalar_select %p31, 0, %s30
      %s33 = sadd.s32 1, %s24
      %s34 = scalar_select %p31, %s33, %s24
      %p35 = scmp.ge.s32.totalorder %s34, 2
      %s36 = scalar_select %p35, 0, %s34
      %s37 = sadd.s32 %s24, %s25
      %s38 = sadd.s32 %s36, %s32
      %s39 = ssub.s32 %s37, %s38
      %p40 = scmp.eq.s32.totalorder %s39, 0
      %s42 = sadd.s32 %s41, 1
      %s43 = scalar_select %p40, %s41, %s42
      %p46 = pneg %p40
      %p47 = scmp.eq.s32.totalorder %s17, 1
      %p48 = por %p46, %p47
      %p49 = scmp.ne.s32.totalorder %s41, %s44
      %p50 = scmp.eq.s32.totalorder %s17, 0
      %p51 = por %p49, %p50
      %p52 = scmp.ne.s32.totalorder %s41, %s44
      %p53 = scmp.eq.s32.totalorder %s22, 1
      %p54 = por %p52, %p53
      %p55 = scmp.ne.s32.totalorder %s44, %s45
      %p56 = scmp.eq.s32.totalorder %s22, 0
      %p57 = por %p55, %p56
      %p58 = scmp.ne.s32.totalorder %s44, %s45
      %p59 = scmp.eq.s32.totalorder %s23, 1
      %p60 = por %p58, %p59
      %p62 = scmp.ne.s32.totalorder %s45, %s61
      %p63 = scmp.eq.s32.totalorder %s23, 0
      %p64 = por %p62, %p63
      %s66 = sadd.s32 %s65, 1
      %p69 = scmp.eq.s32.totalorder %s17, 1
      %p70 = scmp.ne.s32.totalorder %s65, %s67
      %p71 = scmp.eq.s32.totalorder %s17, 0
      %p72 = por %p70, %p71
      %p73 = scmp.ne.s32.totalorder %s65, %s67
      %p74 = scmp.eq.s32.totalorder %s22, 1
      %p75 = por %p73, %p74
      %p76 = scmp.ne.s32.totalorder %s67, %s68
      %p77 = scmp.eq.s32.totalorder %s22, 0
      %p78 = por %p76, %p77
      %p79 = scmp.ne.s32.totalorder %s67, %s68
      %p80 = scmp.eq.s32.totalorder %s23, 1
      %p81 = por %p79, %p80
      %p83 = scmp.ne.s32.totalorder %s68, %s82
      %p84 = scmp.eq.s32.totalorder %s23, 0
      %p85 = por %p83, %p84
      %s87 = sadd.s32 %s86, 1
      %p90 = scmp.eq.s32.totalorder %s17, 1
      %p91 = scmp.ne.s32.totalorder %s86, %s88
      %p92 = scmp.eq.s32.totalorder %s17, 0
      %p93 = por %p91, %p92
      %p94 = scmp.ne.s32.totalorder %s86, %s88
      %p95 = scmp.eq.s32.totalorder %s22, 1
      %p96 = por %p94, %p95
      %p97 = scmp.ne.s32.totalorder %s88, %s89
      %p98 = scmp.eq.s32.totalorder %s22, 0
      %p99 = por %p97, %p98
      %p100 = scmp.ne.s32.totalorder %s88, %s89
      %p101 = scmp.eq.s32.totalorder %s23, 1
      %p102 = por %p100, %p101
      %p104 = scmp.ne.s32.totalorder %s89, %s103
      %p105 = scmp.eq.s32.totalorder %s23, 0
      %p106 = por %p104, %p105
      %s107 = ssub.s32 %s24, %s36
      %p108 = scmp.eq.s32.totalorder %s107, 0
      %s110 = sadd.s32 %s109, 1
      %s111 = scalar_select %p108, %s109, %s110
      %p114 = pneg %p108
      %p115 = scmp.eq.s32.totalorder %s17, 1
      %p116 = por %p114, %p115
      %p117 = scmp.ne.s32.totalorder %s109, %s112
      %p118 = scmp.eq.s32.totalorder %s17, 0
      %p119 = por %p117, %p118
      %p120 = scmp.ne.s32.totalorder %s109, %s112
      %p121 = scmp.eq.s32.totalorder %s22, 1
      %p122 = por %p120, %p121
      %p123 = scmp.ne.s32.totalorder %s112, %s113
      %p124 = scmp.eq.s32.totalorder %s22, 0
      %p125 = por %p123, %p124
      %p126 = scmp.ne.s32.totalorder %s112, %s113
      %p127 = scmp.eq.s32.totalorder %s23, 1
      %p128 = por %p126, %p127
      %p130 = scmp.ne.s32.totalorder %s113, %s129
      %p131 = scmp.eq.s32.totalorder %s23, 0
      %p132 = por %p130, %p131
      %s133 = ssub.s32 %s24, %s36
      %p134 = scmp.eq.s32.totalorder %s133, 0
      %s136 = sadd.s32 %s135, 1
      %s137 = scalar_select %p134, %s135, %s136
      %p140 = pneg %p134
      %p141 = scmp.eq.s32.totalorder %s17, 1
      %p142 = por %p140, %p141
      %p143 = scmp.ne.s32.totalorder %s135, %s138
      %p144 = scmp.eq.s32.totalorder %s17, 0
      %p145 = por %p143, %p144
      %p146 = scmp.ne.s32.totalorder %s135, %s138
      %p147 = scmp.eq.s32.totalorder %s22, 1
      %p148 = por %p146, %p147
      %p149 = scmp.ne.s32.totalorder %s138, %s139
      %p150 = scmp.eq.s32.totalorder %s22, 0
      %p151 = por %p149, %p150
      %p152 = scmp.ne.s32.totalorder %s138, %s139
      %p153 = scmp.eq.s32.totalorder %s23, 1
      %p154 = por %p152, %p153
      %p156 = scmp.ne.s32.totalorder %s139, %s155
      %p157 = scmp.eq.s32.totalorder %s23, 0
      %p158 = por %p156, %p157
      %p159 = scmp.le.s32.totalorder 1, %s17
      %p160 = scmp.lt.s32.totalorder %s17, 3
      %p161 = pnand %p159, %p160
      %p162 = pneg %p161
      // Predicated region
      $region9: #{tpu_custom_call.1} parent=5 // pred_check
        _
      $region10: #{tpu_custom_call.1} parent=5 // pred_check_branch
        %164 = sbr.rel (%p161) target = $region12
      $region11: #{tpu_custom_call.1} parent=5 // pred_region
        %s165 = ssub.s32 %s17, 1
        // Predicated region
        $region13: #{tpu_custom_call.1} parent=11 // pred_check
          %p166 = pneg %p78
        $region14: #{tpu_custom_call.1} parent=11 // pred_check_branch
          %168 = sbr.rel (%p166) target = $region16
        $region15: #{tpu_custom_call.1} parent=11 // pred_region
          _
        $region16: #{tpu_custom_call.1} parent=11 // pred_fallthru
          _
        // Predicated region
        $region17: #{tpu_custom_call.1} parent=11 // pred_check
          %p169 = pneg %p99
        $region18: #{tpu_custom_call.1} parent=11 // pred_check_branch
          %171 = sbr.rel (%p169) target = $region20
        $region19: #{tpu_custom_call.1} parent=11 // pred_region
          _
        $region20: #{tpu_custom_call.1} parent=11 // pred_fallthru
          _
      $region12: #{tpu_custom_call.1} parent=5 // pred_fallthru
        _
      %p172 = scmp.lt.s32.totalorder %s17, 2
      // Predicated region
      $region21: #{tpu_custom_call.1} parent=5 // pred_check
        %p173 = pneg %p172
      $region22: #{tpu_custom_call.1} parent=5 // pred_check_branch
        %175 = sbr.rel (%p173) target = $region24
      $region23: #{tpu_custom_call.1} parent=5 // pred_region
        // Predicated region
        $region25: #{tpu_custom_call.1} parent=23 // pred_check
          %p176 = pneg %p51
        $region26: #{tpu_custom_call.1} parent=23 // pred_check_branch
          %178 = sbr.rel (%p176) target = $region28
        $region27: #{tpu_custom_call.1} parent=23 // pred_region
          %s179 = sadd.s32 %s24, %s25
          %s180 = smul.u32 36, %s179
          %p181 = scmp.lt.s32.totalorder %s180, 71
          %s182 = scalar_select %p181, %s180, 71
          %s183 = smul.addr %s182, 4
          %s184 = scalar_lea.vmem %s0, %s183
          %s185 = sadd.s32 %s24, %s25
          %s186 = smul.u32 36, %s185
        $region28: #{tpu_custom_call.1} parent=23 // pred_fallthru
          _
      $region24: #{tpu_custom_call.1} parent=5 // pred_fallthru
        _
      %p187 = scmp.le.s32.totalorder 1, %s17
      %p188 = scmp.lt.s32.totalorder %s17, 3
      %p189 = pnand %p187, %p188
      %p190 = pneg %p189
      // Predicated region
      $region29: #{tpu_custom_call.1} parent=5 // pred_check
        _
      $region30: #{tpu_custom_call.1} parent=5 // pred_check_branch
        %192 = sbr.rel (%p189) target = $region32
      $region31: #{tpu_custom_call.1} parent=5 // pred_region
        %s193 = ssub.s32 %s17, 1
        %s194 = sadd.s32 %s26, %s27
        %s195 = smul.u32 36, %s194
        %p196 = scmp.lt.s32.totalorder %s195, 71
        %s197 = scalar_select %p196, %s195, 71
        %s198 = smul.addr %s197, 4
        %s199 = scalar_lea.vmem %s0, %s198
        %p200 = pneg %p57
        %p201 = pneg %p54
        %p202 = pneg %p78
        %p203 = pneg %p75
        %p204 = pneg %p99
        %p205 = pneg %p96
        %p206 = pneg %p125
        %p207 = pneg %p122
        %s208 = sand.u32 %s112, 1
        %s209 = scalar_lea.sflag [#allocation3], %s208
        %s210 = sand.u32 %s112, 1
        %s211 = scalar_lea.vmem [#allocation2], %s210
        %p212 = pneg %p151
        %p213 = pneg %p148
        %s214 = sand.u32 %s138, 1
        %s215 = scalar_lea.sflag [#allocation5], %s214
        %s216 = sand.u32 %s138, 1
        %s217 = scalar_lea.vmem [#allocation4], %s216
        %s218 = sadd.s32 %s26, %s27
        %s219 = smul.u32 36, %s218
        %p220 = scmp.lt.s32.totalorder %s219, 71
        %s221 = scalar_select %p220, %s219, 71
        %s222 = smul.addr %s221, 4
        %s223 = scalar_lea.vmem %s0, %s222
        %s224 = sadd.s32 %s26, %s27
        %s225 = smul.u32 36, %s224
        %v227 = vld [vmem:[%s223] sm:$0xf]
        %v228 = vld [vmem:[%s223 + $0x4] sm:$0xf]
        %v229 = vld [vmem:[%s223 + $0x8] sm:$0xf]
        %v230 = vld [vmem:[%s223 + $0xc] sm:$0xf]
        %v231 = vld [vmem:[%s223 + $0x10] sm:$0xf]
        %v232 = vld [vmem:[%s223 + $0x14] sm:$0xf]
        %v233 = vld [vmem:[%s223 + $0x18] sm:$0xf]
        %v234 = vld [vmem:[%s223 + $0x1c] sm:$0xf]
        %v235 = vld [vmem:[%s223 + $0x20] sm:$0xf]
        %v236 = vld [vmem:[%s223 + $0x24] sm:$0xf]
        %v237 = vld [vmem:[%s223 + $0x28] sm:$0xf]
        %v238 = vld [vmem:[%s223 + $0x2c] sm:$0xf]
        %v239 = vld [vmem:[%s223 + $0x30] sm:$0xf]
        %v240 = vld [vmem:[%s223 + $0x34] sm:$0xf]
        %v241 = vld [vmem:[%s223 + $0x38] sm:$0xf]
        %v242 = vld [vmem:[%s223 + $0x3c] sm:$0xf]
        %v243 = vld [vmem:[%s223 + $0x40] sm:$0xf]
        %v244 = vld [vmem:[%s223 + $0x44] sm:$0xf]
        %v245 = vld [vmem:[%s223 + $0x48] sm:$0xf]
        %v246 = vld [vmem:[%s223 + $0x4c] sm:$0xf]
        %v247 = vld [vmem:[%s223 + $0x50] sm:$0xf]
        %v248 = vld [vmem:[%s223 + $0x54] sm:$0xf]
        %v249 = vld [vmem:[%s223 + $0x58] sm:$0xf]
        %v250 = vld [vmem:[%s223 + $0x5c] sm:$0xf]
        %v251 = vld [vmem:[%s223 + $0x60] sm:$0xf]
        %v252 = vld [vmem:[%s223 + $0x64] sm:$0xf]
        %v253 = vld [vmem:[%s223 + $0x68] sm:$0xf]
        %v254 = vld [vmem:[%s223 + $0x6c] sm:$0xf]
        %v255 = vld [vmem:[%s223 + $0x70] sm:$0xf]
        %v256 = vld [vmem:[%s223 + $0x74] sm:$0xf]
        %v257 = vld [vmem:[%s223 + $0x78] sm:$0xf]
        %v258 = vld [vmem:[%s223 + $0x7c] sm:$0xf]
        %v259 = vld [vmem:[%s223 + $0x80] sm:$0xf]
        %v260 = vld [vmem:[%s223 + $0x84] sm:$0xf]
        %v261 = vld [vmem:[%s223 + $0x88] sm:$0xf]
        %v262 = vld [vmem:[%s223 + $0x8c] sm:$0xf]
        %v263 = vld [vmem:[%s1] sm:$0xf]
        %v264 = vld [vmem:[%s1 + $0x4] sm:$0x3]
        %s265 = scalar_lea.vmem %s1, 8
        %v266 = vld [vmem:[%s265] sm:$0xf]
        %v267 = vld [vmem:[%s265 + $0x4] sm:$0x3]
        %v304 = vunpack.c.l.b16 %v227
        %v305 = vunpack.c.l.b16 %v228
        %v306 = vunpack.c.l.b16 %v229
        %v307 = vunpack.c.l.b16 %v230
        %v308 = vunpack.c.l.b16 %v231
        %v309 = vunpack.c.l.b16 %v232
        %v310 = vunpack.c.l.b16 %v233
        %v311 = vunpack.c.l.b16 %v234
        %v312 = vunpack.c.l.b16 %v235
        %v313 = vunpack.c.l.b16 %v236
        %v314 = vunpack.c.l.b16 %v237
        %v315 = vunpack.c.l.b16 %v238
        %v316 = vunpack.c.l.b16 %v239
        %v317 = vunpack.c.l.b16 %v240
        %v318 = vunpack.c.l.b16 %v241
        %v319 = vunpack.c.l.b16 %v242
        %v320 = vunpack.c.l.b16 %v243
        %v321 = vunpack.c.l.b16 %v244
        %v322 = vunpack.c.l.b16 %v245
        %v323 = vunpack.c.l.b16 %v246
        %v324 = vunpack.c.l.b16 %v247
        %v325 = vunpack.c.l.b16 %v248
        %v326 = vunpack.c.l.b16 %v249
        %v327 = vunpack.c.l.b16 %v250
        %v328 = vunpack.c.l.b16 %v251
        %v329 = vunpack.c.l.b16 %v252
        %v330 = vunpack.c.l.b16 %v253
        %v331 = vunpack.c.l.b16 %v254
        %v332 = vunpack.c.l.b16 %v255
        %v333 = vunpack.c.l.b16 %v256
        %v334 = vunpack.c.l.b16 %v257
        %v335 = vunpack.c.l.b16 %v258
        %v336 = vunpack.c.l.b16 %v259
        %v337 = vunpack.c.l.b16 %v260
        %v338 = vunpack.c.l.b16 %v261
        %v339 = vunpack.c.l.b16 %v262
        %v340 = vpack.c.b16 %v305, %v304
        %v341 = vpack.c.b16 %v307, %v306
        %v342 = vpack.c.b16 %v309, %v308
        %v343 = vpack.c.b16 %v311, %v310
        %v344 = vpack.c.b16 %v313, %v312
        %v345 = vpack.c.b16 %v315, %v314
        %v346 = vpack.c.b16 %v317, %v316
        %v347 = vpack.c.b16 %v319, %v318
        %v348 = vpack.c.b16 %v321, %v320
        %v349 = vpack.c.b16 %v323, %v322
        %v350 = vpack.c.b16 %v325, %v324
        %v351 = vpack.c.b16 %v327, %v326
        %v352 = vpack.c.b16 %v329, %v328
        %v353 = vpack.c.b16 %v331, %v330
        %v354 = vpack.c.b16 %v333, %v332
        %v355 = vpack.c.b16 %v335, %v334
        %v356 = vpack.c.b16 %v337, %v336
        %v357 = vpack.c.b16 %v339, %v338
        %v360 = vunpack.c.l.b16 %v266
        %v361 = vunpack.c.l.b16 %v267
        %v362 = vpack.c.b16 %v361, %v360
        %vm363 = vcmask 97280
        %v365 = vsel %vm363, %v340, 0
        %v368 = vsel %vm363, %v341, 0
        %v371 = vsel %vm363, %v342, 0
        %v374 = vsel %vm363, %v343, 0
        %v377 = vsel %vm363, %v344, 0
        %v380 = vsel %vm363, %v345, 0
        %v383 = vsel %vm363, %v346, 0
        %v386 = vsel %vm363, %v347, 0
        %v389 = vsel %vm363, %v348, 0
        %v392 = vsel %vm363, %v349, 0
        %v395 = vsel %vm363, %v350, 0
        %v398 = vsel %vm363, %v351, 0
        %v401 = vsel %vm363, %v352, 0
        %v404 = vsel %vm363, %v353, 0
        %v407 = vsel %vm363, %v354, 0
        %v410 = vsel %vm363, %v355, 0
        %v413 = vsel %vm363, %v356, 0
        %v416 = vsel %vm363, %v357, 0
        %vm418 = vcmask 1045504
        %v420 = vsel %vm418, %v362, 0
        %422 = vmatpush.bf16.msra.mxu0 0
        %423 = vmatpush.bf16.msra.mxu0 0
        %424 = vmatpush.bf16.msra.mxu0 0
        %425 = vmatpush.bf16.msra.mxu0 0
        %426 = vmatpush.bf16.msra.mxu0 0
        %427 = vmatpush.bf16.msra.mxu0 0
        %428 = vmatpush.bf16.msra.mxu0 0
        %429 = vmatpush.bf16.msra.mxu0 %v420
        %430 = vmatmul.bf16.gmra.mxu0 %v365
        %v431 = vpop.f32.mrf.mxu0
        %v432 = vadd.f32 0.0, %v431
        %v433 = vpop.f32.mrf.mxu0
        %v434 = vadd.f32 0.0, %v433
        %435 = vmatmul.bf16.gmra.mxu0 %v368
        %v436 = vpop.f32.mrf.mxu0
        %v437 = vadd.f32 0.0, %v436
        %v438 = vpop.f32.mrf.mxu0
        %v439 = vadd.f32 0.0, %v438
        %440 = vmatmul.bf16.gmra.mxu0 %v371
        %v441 = vpop.f32.mrf.mxu0
        %v442 = vadd.f32 0.0, %v441
        %v443 = vpop.f32.mrf.mxu0
        %v444 = vadd.f32 0.0, %v443
        %445 = vmatmul.bf16.gmra.mxu0 %v374
        %v446 = vpop.f32.mrf.mxu0
        %v447 = vadd.f32 0.0, %v446
        %v448 = vpop.f32.mrf.mxu0
        %v449 = vadd.f32 0.0, %v448
        %450 = vmatmul.bf16.gmra.mxu0 %v377
        %v451 = vpop.f32.mrf.mxu0
        %v452 = vadd.f32 0.0, %v451
        %v453 = vpop.f32.mrf.mxu0
        %v454 = vadd.f32 0.0, %v453
        %455 = vmatmul.bf16.gmra.mxu0 %v380
        %v456 = vpop.f32.mrf.mxu0
        %v457 = vadd.f32 0.0, %v456
        %v458 = vpop.f32.mrf.mxu0
        %v459 = vadd.f32 0.0, %v458
        %460 = vmatmul.bf16.gmra.mxu0 %v383
        %v461 = vpop.f32.mrf.mxu0
        %v462 = vadd.f32 0.0, %v461
        %v463 = vpop.f32.mrf.mxu0
        %v464 = vadd.f32 0.0, %v463
        %465 = vmatmul.bf16.gmra.mxu0 %v386
        %v466 = vpop.f32.mrf.mxu0
        %v467 = vadd.f32 0.0, %v466
        %v468 = vpop.f32.mrf.mxu0
        %v469 = vadd.f32 0.0, %v468
        %470 = vmatmul.bf16.gmra.mxu0 %v389
        %v471 = vpop.f32.mrf.mxu0
        %v472 = vadd.f32 0.0, %v471
        %v473 = vpop.f32.mrf.mxu0
        %v474 = vadd.f32 0.0, %v473
        %475 = vmatmul.bf16.gmra.mxu0 %v392
        %v476 = vpop.f32.mrf.mxu0
        %v477 = vadd.f32 0.0, %v476
        %v478 = vpop.f32.mrf.mxu0
        %v479 = vadd.f32 0.0, %v478
        %480 = vmatmul.bf16.gmra.mxu0 %v395
        %v481 = vpop.f32.mrf.mxu0
        %v482 = vadd.f32 0.0, %v481
        %v483 = vpop.f32.mrf.mxu0
        %v484 = vadd.f32 0.0, %v483
        %485 = vmatmul.bf16.gmra.mxu0 %v398
        %v486 = vpop.f32.mrf.mxu0
        %v487 = vadd.f32 0.0, %v486
        %v488 = vpop.f32.mrf.mxu0
        %v489 = vadd.f32 0.0, %v488
        %490 = vmatmul.bf16.gmra.mxu0 %v401
        %v491 = vpop.f32.mrf.mxu0
        %v492 = vadd.f32 0.0, %v491
        %v493 = vpop.f32.mrf.mxu0
        %v494 = vadd.f32 0.0, %v493
        %495 = vmatmul.bf16.gmra.mxu0 %v404
        %v496 = vpop.f32.mrf.mxu0
        %v497 = vadd.f32 0.0, %v496
        %v498 = vpop.f32.mrf.mxu0
        %v499 = vadd.f32 0.0, %v498
        %500 = vmatmul.bf16.gmra.mxu0 %v407
        %v501 = vpop.f32.mrf.mxu0
        %v502 = vadd.f32 0.0, %v501
        %v503 = vpop.f32.mrf.mxu0
        %v504 = vadd.f32 0.0, %v503
        %505 = vmatmul.bf16.gmra.mxu0 %v410
        %v506 = vpop.f32.mrf.mxu0
        %v507 = vadd.f32 0.0, %v506
        %v508 = vpop.f32.mrf.mxu0
        %v509 = vadd.f32 0.0, %v508
        %510 = vmatmul.bf16.gmra.mxu0 %v413
        %v511 = vpop.f32.mrf.mxu0
        %v512 = vadd.f32 0.0, %v511
        %v513 = vpop.f32.mrf.mxu0
        %v514 = vadd.f32 0.0, %v513
        %515 = vmatmul.bf16.gmra.mxu0 %v416
        %v516 = vpop.f32.mrf.mxu0
        %v517 = vadd.f32 0.0, %v516
        %v518 = vpop.f32.mrf.mxu0
        %v519 = vadd.f32 0.0, %v518
        %520 = vdwg.mxu0
        %v521 = vrot.slane %v432, 1
        %v522 = vrot.slane %v434, 1
        %v523 = vrot.slane %v437, 1
        %v524 = vrot.slane %v439, 1
        %v525 = vrot.slane %v442, 1
        %v526 = vrot.slane %v444, 1
        %v527 = vrot.slane %v447, 1
        %v528 = vrot.slane %v449, 1
        %v529 = vrot.slane %v452, 1
        %v530 = vrot.slane %v454, 1
        %v531 = vrot.slane %v457, 1
        %v532 = vrot.slane %v459, 1
        %v533 = vrot.slane %v462, 1
        %v534 = vrot.slane %v464, 1
        %v535 = vrot.slane %v467, 1
        %v536 = vrot.slane %v469, 1
        %v537 = vrot.slane %v472, 1
        %v538 = vrot.slane %v474, 1
        %v539 = vrot.slane %v477, 1
        %v540 = vrot.slane %v479, 1
        %v541 = vrot.slane %v482, 1
        %v542 = vrot.slane %v484, 1
        %v543 = vrot.slane %v487, 1
        %v544 = vrot.slane %v489, 1
        %v545 = vrot.slane %v492, 1
        %v546 = vrot.slane %v494, 1
        %v547 = vrot.slane %v497, 1
        %v548 = vrot.slane %v499, 1
        %v549 = vrot.slane %v502, 1
        %v550 = vrot.slane %v504, 1
        %v551 = vrot.slane %v507, 1
        %v552 = vrot.slane %v509, 1
        %v553 = vrot.slane %v512, 1
        %v554 = vrot.slane %v514, 1
        %v555 = vrot.slane %v517, 1
        %v556 = vrot.slane %v519, 1
        %v557 = vlaneseq
        %v558 = vshrl.u32 %v557, 7
        %vm559 = vcmp.lt.s32.totalorder %v558, 7
        %v560 = vsel %vm559, %v555, %v556
        %v561 = vsel %vm559, %v554, %v555
        %v562 = vsel %vm559, %v553, %v554
        %v563 = vsel %vm559, %v552, %v553
        %v564 = vsel %vm559, %v551, %v552
        %v565 = vsel %vm559, %v550, %v551
        %v566 = vsel %vm559, %v549, %v550
        %v567 = vsel %vm559, %v548, %v549
        %v568 = vsel %vm559, %v547, %v548
        %v569 = vsel %vm559, %v546, %v547
        %v570 = vsel %vm559, %v545, %v546
        %v571 = vsel %vm559, %v544, %v545
        %v572 = vsel %vm559, %v543, %v544
        %v573 = vsel %vm559, %v542, %v543
        %v574 = vsel %vm559, %v541, %v542
        %v575 = vsel %vm559, %v540, %v541
        %v576 = vsel %vm559, %v539, %v540
        %v577 = vsel %vm559, %v538, %v539
        %v578 = vsel %vm559, %v537, %v538
        %v579 = vsel %vm559, %v536, %v537
        %v580 = vsel %vm559, %v535, %v536
        %v581 = vsel %vm559, %v534, %v535
        %v582 = vsel %vm559, %v533, %v534
        %v583 = vsel %vm559, %v532, %v533
        %v584 = vsel %vm559, %v531, %v532
        %v585 = vsel %vm559, %v530, %v531
        %v586 = vsel %vm559, %v529, %v530
        %v587 = vsel %vm559, %v528, %v529
        %v588 = vsel %vm559, %v527, %v528
        %v589 = vsel %vm559, %v526, %v527
        %v590 = vsel %vm559, %v525, %v526
        %v591 = vsel %vm559, %v524, %v525
        %v592 = vsel %vm559, %v523, %v524
        %v593 = vsel %vm559, %v522, %v523
        %v594 = vsel %vm559, %v521, %v522
        %v595 = vsel %vm559, %v556, %v521
        %v598 = vunpack.c.l.b16 %v263
        %v599 = vunpack.c.l.b16 %v264
        %v600 = vpack.c.b16 %v599, %v598
        %v602 = vsel %vm418, %v600, 0
        %604 = vmatpush.bf16.msra.mxu0 0
        %605 = vmatpush.bf16.msra.mxu0 0
        %606 = vmatpush.bf16.msra.mxu0 0
        %607 = vmatpush.bf16.msra.mxu0 0
        %608 = vmatpush.bf16.msra.mxu0 0
        %609 = vmatpush.bf16.msra.mxu0 0
        %610 = vmatpush.bf16.msra.mxu0 0
        %611 = vmatpush.bf16.msra.mxu0 %v602
        %612 = vmatmul.bf16.gmra.mxu0 %v365
        %v613 = vpop.f32.mrf.mxu0
        %v614 = vadd.f32 %v594, %v613
        %v615 = vpop.f32.mrf.mxu0
        %v616 = vadd.f32 %v593, %v615
        %617 = vmatmul.bf16.gmra.mxu0 %v368
        %v618 = vpop.f32.mrf.mxu0
        %v619 = vadd.f32 %v592, %v618
        %v620 = vpop.f32.mrf.mxu0
        %v621 = vadd.f32 %v591, %v620
        %622 = vmatmul.bf16.gmra.mxu0 %v371
        %v623 = vpop.f32.mrf.mxu0
        %v624 = vadd.f32 %v590, %v623
        %v625 = vpop.f32.mrf.mxu0
        %v626 = vadd.f32 %v589, %v625
        %627 = vmatmul.bf16.gmra.mxu0 %v374
        %v628 = vpop.f32.mrf.mxu0
        %v629 = vadd.f32 %v588, %v628
        %v630 = vpop.f32.mrf.mxu0
        %v631 = vadd.f32 %v587, %v630
        %632 = vmatmul.bf16.gmra.mxu0 %v377
        %v633 = vpop.f32.mrf.mxu0
        %v634 = vadd.f32 %v586, %v633
        %v635 = vpop.f32.mrf.mxu0
        %v636 = vadd.f32 %v585, %v635
        %637 = vmatmul.bf16.gmra.mxu0 %v380
        %v638 = vpop.f32.mrf.mxu0
        %v639 = vadd.f32 %v584, %v638
        %v640 = vpop.f32.mrf.mxu0
        %v641 = vadd.f32 %v583, %v640
        %642 = vmatmul.bf16.gmra.mxu0 %v383
        %v643 = vpop.f32.mrf.mxu0
        %v644 = vadd.f32 %v582, %v643
        %v645 = vpop.f32.mrf.mxu0
        %v646 = vadd.f32 %v581, %v645
        %647 = vmatmul.bf16.gmra.mxu0 %v386
        %v648 = vpop.f32.mrf.mxu0
        %v649 = vadd.f32 %v580, %v648
        %v650 = vpop.f32.mrf.mxu0
        %v651 = vadd.f32 %v579, %v650
        %652 = vmatmul.bf16.gmra.mxu0 %v389
        %v653 = vpop.f32.mrf.mxu0
        %v654 = vadd.f32 %v578, %v653
        %v655 = vpop.f32.mrf.mxu0
        %v656 = vadd.f32 %v577, %v655
        %657 = vmatmul.bf16.gmra.mxu0 %v392
        %v658 = vpop.f32.mrf.mxu0
        %v659 = vadd.f32 %v576, %v658
        %v660 = vpop.f32.mrf.mxu0
        %v661 = vadd.f32 %v575, %v660
        %662 = vmatmul.bf16.gmra.mxu0 %v395
        %v663 = vpop.f32.mrf.mxu0
        %v664 = vadd.f32 %v574, %v663
        %v665 = vpop.f32.mrf.mxu0
        %v666 = vadd.f32 %v573, %v665
        %667 = vmatmul.bf16.gmra.mxu0 %v398
        %v668 = vpop.f32.mrf.mxu0
        %v669 = vadd.f32 %v572, %v668
        %v670 = vpop.f32.mrf.mxu0
        %v671 = vadd.f32 %v571, %v670
        %672 = vmatmul.bf16.gmra.mxu0 %v401
        %v673 = vpop.f32.mrf.mxu0
        %v674 = vadd.f32 %v570, %v673
        %v675 = vpop.f32.mrf.mxu0
        %v676 = vadd.f32 %v569, %v675
        %677 = vmatmul.bf16.gmra.mxu0 %v404
        %v678 = vpop.f32.mrf.mxu0
        %v679 = vadd.f32 %v568, %v678
        %v680 = vpop.f32.mrf.mxu0
        %v681 = vadd.f32 %v567, %v680
        %682 = vmatmul.bf16.gmra.mxu0 %v407
        %v683 = vpop.f32.mrf.mxu0
        %v684 = vadd.f32 %v566, %v683
        %v685 = vpop.f32.mrf.mxu0
        %v686 = vadd.f32 %v565, %v685
        %687 = vmatmul.bf16.gmra.mxu0 %v410
        %v688 = vpop.f32.mrf.mxu0
        %v689 = vadd.f32 %v564, %v688
        %v690 = vpop.f32.mrf.mxu0
        %v691 = vadd.f32 %v563, %v690
        %692 = vmatmul.bf16.gmra.mxu0 %v413
        %v693 = vpop.f32.mrf.mxu0
        %v694 = vadd.f32 %v562, %v693
        %v695 = vpop.f32.mrf.mxu0
        %v696 = vadd.f32 %v561, %v695
        %697 = vmatmul.bf16.gmra.mxu0 %v416
        %v698 = vpop.f32.mrf.mxu0
        %v699 = vadd.f32 %v560, %v698
        %v700 = vpop.f32.mrf.mxu0
        %v701 = vadd.f32 %v595, %v700
        %702 = vdwg.mxu0
        %s703 = scalar_lea.vmem %s1, 16
        %v704 = vld [vmem:[%s703] sm:$0xf]
        %v705 = vld [vmem:[%s703 + $0x4] sm:$0x3]
        %v708 = vunpack.c.l.b16 %v704
        %v709 = vunpack.c.l.b16 %v705
        %v710 = vpack.c.b16 %v709, %v708
        %v712 = vsel %vm418, %v710, 0
        %714 = vmatpush.bf16.msra.mxu0 0
        %715 = vmatpush.bf16.msra.mxu0 0
        %716 = vmatpush.bf16.msra.mxu0 0
        %717 = vmatpush.bf16.msra.mxu0 0
        %718 = vmatpush.bf16.msra.mxu0 0
        %719 = vmatpush.bf16.msra.mxu0 0
        %720 = vmatpush.bf16.msra.mxu0 0
        %721 = vmatpush.bf16.msra.mxu0 %v712
        %722 = vmatmul.bf16.gmra.mxu0 %v365
        %v723 = vpop.f32.mrf.mxu0
        %v724 = vadd.f32 0.0, %v723
        %v725 = vpop.f32.mrf.mxu0
        %v726 = vadd.f32 0.0, %v725
        %727 = vmatmul.bf16.gmra.mxu0 %v368
        %v728 = vpop.f32.mrf.mxu0
        %v729 = vadd.f32 0.0, %v728
        %v730 = vpop.f32.mrf.mxu0
        %v731 = vadd.f32 0.0, %v730
        %732 = vmatmul.bf16.gmra.mxu0 %v371
        %v733 = vpop.f32.mrf.mxu0
        %v734 = vadd.f32 0.0, %v733
        %v735 = vpop.f32.mrf.mxu0
        %v736 = vadd.f32 0.0, %v735
        %737 = vmatmul.bf16.gmra.mxu0 %v374
        %v738 = vpop.f32.mrf.mxu0
        %v739 = vadd.f32 0.0, %v738
        %v740 = vpop.f32.mrf.mxu0
        %v741 = vadd.f32 0.0, %v740
        %742 = vmatmul.bf16.gmra.mxu0 %v377
        %v743 = vpop.f32.mrf.mxu0
        %v744 = vadd.f32 0.0, %v743
        %v745 = vpop.f32.mrf.mxu0
        %v746 = vadd.f32 0.0, %v745
        %747 = vmatmul.bf16.gmra.mxu0 %v380
        %v748 = vpop.f32.mrf.mxu0
        %v749 = vadd.f32 0.0, %v748
        %v750 = vpop.f32.mrf.mxu0
        %v751 = vadd.f32 0.0, %v750
        %752 = vmatmul.bf16.gmra.mxu0 %v383
        %v753 = vpop.f32.mrf.mxu0
        %v754 = vadd.f32 0.0, %v753
        %v755 = vpop.f32.mrf.mxu0
        %v756 = vadd.f32 0.0, %v755
        %757 = vmatmul.bf16.gmra.mxu0 %v386
        %v758 = vpop.f32.mrf.mxu0
        %v759 = vadd.f32 0.0, %v758
        %v760 = vpop.f32.mrf.mxu0
        %v761 = vadd.f32 0.0, %v760
        %762 = vmatmul.bf16.gmra.mxu0 %v389
        %v763 = vpop.f32.mrf.mxu0
        %v764 = vadd.f32 0.0, %v763
        %v765 = vpop.f32.mrf.mxu0
        %v766 = vadd.f32 0.0, %v765
        %767 = vmatmul.bf16.gmra.mxu0 %v392
        %v768 = vpop.f32.mrf.mxu0
        %v769 = vadd.f32 0.0, %v768
        %v770 = vpop.f32.mrf.mxu0
        %v771 = vadd.f32 0.0, %v770
        %772 = vmatmul.bf16.gmra.mxu0 %v395
        %v773 = vpop.f32.mrf.mxu0
        %v774 = vadd.f32 0.0, %v773
        %v775 = vpop.f32.mrf.mxu0
        %v776 = vadd.f32 0.0, %v775
        %777 = vmatmul.bf16.gmra.mxu0 %v398
        %v778 = vpop.f32.mrf.mxu0
        %v779 = vadd.f32 0.0, %v778
        %v780 = vpop.f32.mrf.mxu0
        %v781 = vadd.f32 0.0, %v780
        %782 = vmatmul.bf16.gmra.mxu0 %v401
        %v783 = vpop.f32.mrf.mxu0
        %v784 = vadd.f32 0.0, %v783
        %v785 = vpop.f32.mrf.mxu0
        %v786 = vadd.f32 0.0, %v785
        %787 = vmatmul.bf16.gmra.mxu0 %v404
        %v788 = vpop.f32.mrf.mxu0
        %v789 = vadd.f32 0.0, %v788
        %v790 = vpop.f32.mrf.mxu0
        %v791 = vadd.f32 0.0, %v790
        %792 = vmatmul.bf16.gmra.mxu0 %v407
        %v793 = vpop.f32.mrf.mxu0
        %v794 = vadd.f32 0.0, %v793
        %v795 = vpop.f32.mrf.mxu0
        %v796 = vadd.f32 0.0, %v795
        %797 = vmatmul.bf16.gmra.mxu0 %v410
        %v798 = vpop.f32.mrf.mxu0
        %v799 = vadd.f32 0.0, %v798
        %v800 = vpop.f32.mrf.mxu0
        %v801 = vadd.f32 0.0, %v800
        %802 = vmatmul.bf16.gmra.mxu0 %v413
        %v803 = vpop.f32.mrf.mxu0
        %v804 = vadd.f32 0.0, %v803
        %v805 = vpop.f32.mrf.mxu0
        %v806 = vadd.f32 0.0, %v805
        %807 = vmatmul.bf16.gmra.mxu0 %v416
        %v808 = vpop.f32.mrf.mxu0
        %v809 = vadd.f32 0.0, %v808
        %v810 = vpop.f32.mrf.mxu0
        %v811 = vadd.f32 0.0, %v810
        %812 = vdwg.mxu0
        %v813 = vrot.slane %v724, 2
        %v814 = vrot.slane %v726, 2
        %v815 = vrot.slane %v729, 2
        %v816 = vrot.slane %v731, 2
        %v817 = vrot.slane %v734, 2
        %v818 = vrot.slane %v736, 2
        %v819 = vrot.slane %v739, 2
        %v820 = vrot.slane %v741, 2
        %v821 = vrot.slane %v744, 2
        %v822 = vrot.slane %v746, 2
        %v823 = vrot.slane %v749, 2
        %v824 = vrot.slane %v751, 2
        %v825 = vrot.slane %v754, 2
        %v826 = vrot.slane %v756, 2
        %v827 = vrot.slane %v759, 2
        %v828 = vrot.slane %v761, 2
        %v829 = vrot.slane %v764, 2
        %v830 = vrot.slane %v766, 2
        %v831 = vrot.slane %v769, 2
        %v832 = vrot.slane %v771, 2
        %v833 = vrot.slane %v774, 2
        %v834 = vrot.slane %v776, 2
        %v835 = vrot.slane %v779, 2
        %v836 = vrot.slane %v781, 2
        %v837 = vrot.slane %v784, 2
        %v838 = vrot.slane %v786, 2
        %v839 = vrot.slane %v789, 2
        %v840 = vrot.slane %v791, 2
        %v841 = vrot.slane %v794, 2
        %v842 = vrot.slane %v796, 2
        %v843 = vrot.slane %v799, 2
        %v844 = vrot.slane %v801, 2
        %v845 = vrot.slane %v804, 2
        %v846 = vrot.slane %v806, 2
        %v847 = vrot.slane %v809, 2
        %v848 = vrot.slane %v811, 2
        %vm849 = vcmp.lt.s32.totalorder %v558, 6
        %v850 = vsel %vm849, %v847, %v848
        %v851 = vsel %vm849, %v846, %v847
        %v852 = vsel %vm849, %v845, %v846
        %v853 = vsel %vm849, %v844, %v845
        %v854 = vsel %vm849, %v843, %v844
        %v855 = vsel %vm849, %v842, %v843
        %v856 = vsel %vm849, %v841, %v842
        %v857 = vsel %vm849, %v840, %v841
        %v858 = vsel %vm849, %v839, %v840
        %v859 = vsel %vm849, %v838, %v839
        %v860 = vsel %vm849, %v837, %v838
        %v861 = vsel %vm849, %v836, %v837
        %v862 = vsel %vm849, %v835, %v836
        %v863 = vsel %vm849, %v834, %v835
        %v864 = vsel %vm849, %v833, %v834
        %v865 = vsel %vm849, %v832, %v833
        %v866 = vsel %vm849, %v831, %v832
        %v867 = vsel %vm849, %v830, %v831
        %v868 = vsel %vm849, %v829, %v830
        %v869 = vsel %vm849, %v828, %v829
        %v870 = vsel %vm849, %v827, %v828
        %v871 = vsel %vm849, %v826, %v827
        %v872 = vsel %vm849, %v825, %v826
        %v873 = vsel %vm849, %v824, %v825
        %v874 = vsel %vm849, %v823, %v824
        %v875 = vsel %vm849, %v822, %v823
        %v876 = vsel %vm849, %v821, %v822
        %v877 = vsel %vm849, %v820, %v821
        %v878 = vsel %vm849, %v819, %v820
        %v879 = vsel %vm849, %v818, %v819
        %v880 = vsel %vm849, %v817, %v818
        %v881 = vsel %vm849, %v816, %v817
        %v882 = vsel %vm849, %v815, %v816
        %v883 = vsel %vm849, %v814, %v815
        %v884 = vsel %vm849, %v813, %v814
        %v885 = vsel %vm849, %v848, %v813
        %v886 = vadd.f32 %v614, %v884
        %v887 = vadd.f32 %v616, %v883
        %v888 = vadd.f32 %v619, %v882
        %v889 = vadd.f32 %v621, %v881
        %v890 = vadd.f32 %v624, %v880
        %v891 = vadd.f32 %v626, %v879
        %v892 = vadd.f32 %v629, %v878
        %v893 = vadd.f32 %v631, %v877
        %v894 = vadd.f32 %v634, %v876
        %v895 = vadd.f32 %v636, %v875
        %v896 = vadd.f32 %v639, %v874
        %v897 = vadd.f32 %v641, %v873
        %v898 = vadd.f32 %v644, %v872
        %v899 = vadd.f32 %v646, %v871
        %v900 = vadd.f32 %v649, %v870
        %v901 = vadd.f32 %v651, %v869
        %v902 = vadd.f32 %v654, %v868
        %v903 = vadd.f32 %v656, %v867
        %v904 = vadd.f32 %v659, %v866
        %v905 = vadd.f32 %v661, %v865
        %v906 = vadd.f32 %v664, %v864
        %v907 = vadd.f32 %v666, %v863
        %v908 = vadd.f32 %v669, %v862
        %v909 = vadd.f32 %v671, %v861
        %v910 = vadd.f32 %v674, %v860
        %v911 = vadd.f32 %v676, %v859
        %v912 = vadd.f32 %v679, %v858
        %v913 = vadd.f32 %v681, %v857
        %v914 = vadd.f32 %v684, %v856
        %v915 = vadd.f32 %v686, %v855
        %v916 = vadd.f32 %v689, %v854
        %v917 = vadd.f32 %v691, %v853
        %v918 = vadd.f32 %v694, %v852
        %v919 = vadd.f32 %v696, %v851
        %v920 = vadd.f32 %v699, %v850
        %v921 = vadd.f32 %v701, %v885
        %v922 = vld [vmem:[%s2] sm:$0xff]
        %v923 = vld [vmem:[%s2 + $0x8] sm:$0xff]
        %v924 = vld [vmem:[%s2 + $0x10] sm:$0xff]
        %v925 = vld [vmem:[%s2 + $0x18] sm:$0xff]
        %v926 = vld [vmem:[%s2 + $0x20] sm:$0xff]
        %v927 = vld [vmem:[%s2 + $0x28] sm:$0xff]
        %v928 = vld [vmem:[%s2 + $0x30] sm:$0xff]
        %v929 = vld [vmem:[%s2 + $0x38] sm:$0xff]
        %v930 = vld [vmem:[%s2 + $0x40] sm:$0xff]
        %v931 = vld [vmem:[%s2 + $0x48] sm:$0xff]
        %v932 = vld [vmem:[%s2 + $0x50] sm:$0xff]
        %v933 = vld [vmem:[%s2 + $0x58] sm:$0xff]
        %v934 = vld [vmem:[%s2 + $0x60] sm:$0xff]
        %v935 = vld [vmem:[%s2 + $0x68] sm:$0xff]
        %v936 = vld [vmem:[%s2 + $0x70] sm:$0xff]
        %v937 = vld [vmem:[%s2 + $0x78] sm:$0xff]
        %v938 = vld [vmem:[%s2 + $0x80] sm:$0xff]
        %v939 = vld [vmem:[%s2 + $0x88] sm:$0xff]
        %v940 = vld [vmem:[%s2 + $0x90] sm:$0xff]
        %v941 = vld [vmem:[%s2 + $0x98] sm:$0xff]
        %v942 = vld [vmem:[%s2 + $0xa0] sm:$0xff]
        %v943 = vld [vmem:[%s2 + $0xa8] sm:$0xff]
        %v944 = vld [vmem:[%s2 + $0xb0] sm:$0xff]
        %v945 = vld [vmem:[%s2 + $0xb8] sm:$0xff]
        %v946 = vld [vmem:[%s2 + $0xc0] sm:$0xff]
        %v947 = vld [vmem:[%s2 + $0xc8] sm:$0xff]
        %v948 = vld [vmem:[%s2 + $0xd0] sm:$0xff]
        %v949 = vld [vmem:[%s2 + $0xd8] sm:$0xff]
        %v950 = vld [vmem:[%s2 + $0xe0] sm:$0xff]
        %v951 = vld [vmem:[%s2 + $0xe8] sm:$0xff]
        %v952 = vld [vmem:[%s2 + $0xf0] sm:$0xff]
        %v953 = vld [vmem:[%s2 + $0xf8] sm:$0xff]
        %v954 = vld [vmem:[%s2 + $0x100] sm:$0xff]
        %v955 = vld [vmem:[%s2 + $0x108] sm:$0xff]
        %v956 = vld [vmem:[%s2 + $0x110] sm:$0xff]
        %v957 = vld [vmem:[%s2 + $0x118] sm:$0xff]
        %959 = vset.pattern.permute.xlu0 0
        %960 = vperm.xlu0 %959, %v922
        %v961 = vpop.permute.xlu0 %960
        %964 = vset.pattern.permute.xlu0 0
        %965 = vperm.xlu0 %964, %v923
        %v966 = vpop.permute.xlu0 %965
        %969 = vset.pattern.permute.xlu0 0
        %970 = vperm.xlu0 %969, %v924
        %v971 = vpop.permute.xlu0 %970
        %974 = vset.pattern.permute.xlu0 0
        %975 = vperm.xlu0 %974, %v925
        %v976 = vpop.permute.xlu0 %975
        %979 = vset.pattern.permute.xlu0 0
        %980 = vperm.xlu0 %979, %v926
        %v981 = vpop.permute.xlu0 %980
        %984 = vset.pattern.permute.xlu0 0
        %985 = vperm.xlu0 %984, %v927
        %v986 = vpop.permute.xlu0 %985
        %989 = vset.pattern.permute.xlu0 0
        %990 = vperm.xlu0 %989, %v928
        %v991 = vpop.permute.xlu0 %990
        %994 = vset.pattern.permute.xlu0 0
        %995 = vperm.xlu0 %994, %v929
        %v996 = vpop.permute.xlu0 %995
        %999 = vset.pattern.permute.xlu0 0
        %1000 = vperm.xlu0 %999, %v930
        %v1001 = vpop.permute.xlu0 %1000
        %1004 = vset.pattern.permute.xlu0 0
        %1005 = vperm.xlu0 %1004, %v931
        %v1006 = vpop.permute.xlu0 %1005
        %1009 = vset.pattern.permute.xlu0 0
        %1010 = vperm.xlu0 %1009, %v932
        %v1011 = vpop.permute.xlu0 %1010
        %1014 = vset.pattern.permute.xlu0 0
        %1015 = vperm.xlu0 %1014, %v933
        %v1016 = vpop.permute.xlu0 %1015
        %1019 = vset.pattern.permute.xlu0 0
        %1020 = vperm.xlu0 %1019, %v934
        %v1021 = vpop.permute.xlu0 %1020
        %1024 = vset.pattern.permute.xlu0 0
        %1025 = vperm.xlu0 %1024, %v935
        %v1026 = vpop.permute.xlu0 %1025
        %1029 = vset.pattern.permute.xlu0 0
        %1030 = vperm.xlu0 %1029, %v936
        %v1031 = vpop.permute.xlu0 %1030
        %1034 = vset.pattern.permute.xlu0 0
        %1035 = vperm.xlu0 %1034, %v937
        %v1036 = vpop.permute.xlu0 %1035
        %1039 = vset.pattern.permute.xlu0 0
        %1040 = vperm.xlu0 %1039, %v938
        %v1041 = vpop.permute.xlu0 %1040
        %1044 = vset.pattern.permute.xlu0 0
        %1045 = vperm.xlu0 %1044, %v939
        %v1046 = vpop.permute.xlu0 %1045
        %1049 = vset.pattern.permute.xlu0 0
        %1050 = vperm.xlu0 %1049, %v940
        %v1051 = vpop.permute.xlu0 %1050
        %1054 = vset.pattern.permute.xlu0 0
        %1055 = vperm.xlu0 %1054, %v941
        %v1056 = vpop.permute.xlu0 %1055
        %1059 = vset.pattern.permute.xlu0 0
        %1060 = vperm.xlu0 %1059, %v942
        %v1061 = vpop.permute.xlu0 %1060
        %1064 = vset.pattern.permute.xlu0 0
        %1065 = vperm.xlu0 %1064, %v943
        %v1066 = vpop.permute.xlu0 %1065
        %1069 = vset.pattern.permute.xlu0 0
        %1070 = vperm.xlu0 %1069, %v944
        %v1071 = vpop.permute.xlu0 %1070
        %1074 = vset.pattern.permute.xlu0 0
        %1075 = vperm.xlu0 %1074, %v945
        %v1076 = vpop.permute.xlu0 %1075
        %1079 = vset.pattern.permute.xlu0 0
        %1080 = vperm.xlu0 %1079, %v946
        %v1081 = vpop.permute.xlu0 %1080
        %1084 = vset.pattern.permute.xlu0 0
        %1085 = vperm.xlu0 %1084, %v947
        %v1086 = vpop.permute.xlu0 %1085
        %1089 = vset.pattern.permute.xlu0 0
        %1090 = vperm.xlu0 %1089, %v948
        %v1091 = vpop.permute.xlu0 %1090
        %1094 = vset.pattern.permute.xlu0 0
        %1095 = vperm.xlu0 %1094, %v949
        %v1096 = vpop.permute.xlu0 %1095
        %1099 = vset.pattern.permute.xlu0 0
        %1100 = vperm.xlu0 %1099, %v950
        %v1101 = vpop.permute.xlu0 %1100
        %1104 = vset.pattern.permute.xlu0 0
        %1105 = vperm.xlu0 %1104, %v951
        %v1106 = vpop.permute.xlu0 %1105
        %1109 = vset.pattern.permute.xlu0 0
        %1110 = vperm.xlu0 %1109, %v952
        %v1111 = vpop.permute.xlu0 %1110
        %1114 = vset.pattern.permute.xlu0 0
        %1115 = vperm.xlu0 %1114, %v953
        %v1116 = vpop.permute.xlu0 %1115
        %1119 = vset.pattern.permute.xlu0 0
        %1120 = vperm.xlu0 %1119, %v954
        %v1121 = vpop.permute.xlu0 %1120
        %1124 = vset.pattern.permute.xlu0 0
        %1125 = vperm.xlu0 %1124, %v955
        %v1126 = vpop.permute.xlu0 %1125
        %1129 = vset.pattern.permute.xlu0 0
        %1130 = vperm.xlu0 %1129, %v956
        %v1131 = vpop.permute.xlu0 %1130
        %1134 = vset.pattern.permute.xlu0 0
        %1135 = vperm.xlu0 %1134, %v957
        %v1136 = vpop.permute.xlu0 %1135
        %v1138 = vmul.f32 %v886, %v961
        %v1139 = vmul.f32 %v887, %v966
        %v1140 = vmul.f32 %v888, %v971
        %v1141 = vmul.f32 %v889, %v976
        %v1142 = vmul.f32 %v890, %v981
        %v1143 = vmul.f32 %v891, %v986
        %v1144 = vmul.f32 %v892, %v991
        %v1145 = vmul.f32 %v893, %v996
        %v1146 = vmul.f32 %v894, %v1001
        %v1147 = vmul.f32 %v895, %v1006
        %v1148 = vmul.f32 %v896, %v1011
        %v1149 = vmul.f32 %v897, %v1016
        %v1150 = vmul.f32 %v898, %v1021
        %v1151 = vmul.f32 %v899, %v1026
        %v1152 = vmul.f32 %v900, %v1031
        %v1153 = vmul.f32 %v901, %v1036
        %v1154 = vmul.f32 %v902, %v1041
        %v1155 = vmul.f32 %v903, %v1046
        %v1156 = vmul.f32 %v904, %v1051
        %v1157 = vmul.f32 %v905, %v1056
        %v1158 = vmul.f32 %v906, %v1061
        %v1159 = vmul.f32 %v907, %v1066
        %v1160 = vmul.f32 %v908, %v1071
        %v1161 = vmul.f32 %v909, %v1076
        %v1162 = vmul.f32 %v910, %v1081
        %v1163 = vmul.f32 %v911, %v1086
        %v1164 = vmul.f32 %v912, %v1091
        %v1165 = vmul.f32 %v913, %v1096
        %v1166 = vmul.f32 %v914, %v1101
        %v1167 = vmul.f32 %v915, %v1106
        %v1168 = vmul.f32 %v916, %v1111
        %v1169 = vmul.f32 %v917, %v1116
        %v1170 = vmul.f32 %v918, %v1121
        %v1171 = vmul.f32 %v919, %v1126
        %v1172 = vmul.f32 %v920, %v1131
        %v1173 = vmul.f32 %v921, %v1136
        %p1174 = scmp.eq.s32.totalorder %s27, 0
        // Predicated region
        $region33: #{tpu_custom_call.1} parent=31 // pred_check
          %p1175 = pneg %p1174
        $region34: #{tpu_custom_call.1} parent=31 // pred_check_branch
          %1177 = sbr.rel (%p1175) target = $region36
        $region35: #{tpu_custom_call.1} parent=31 // pred_region
          %vm1178 = vcmask 57344
          %1179 = vst.msk [vmem:[%s211] sm:$0x1] %vm1178, 0.0
          %1180 = vst.msk [vmem:[%s217] sm:$0x1] %vm1178, 0.0
        $region36: #{tpu_custom_call.1} parent=31 // pred_fallthru
          _
        %v1181 = vld [vmem:[%s211] sm:$0x1]
        %vm1182 = vcmask 64512
        %v1183 = vsel %vm1182, %v1138, 0.0
        %v1184 = vsel %vm1182, %v1139, 0.0
        %v1185 = vadd.f32 %v1183, %v1184
        %v1186 = vsel %vm1182, %v1140, 0.0
        %v1187 = vadd.f32 %v1185, %v1186
        %v1188 = vsel %vm1182, %v1141, 0.0
        %v1189 = vadd.f32 %v1187, %v1188
        %v1190 = vsel %vm1182, %v1142, 0.0
        %v1191 = vadd.f32 %v1189, %v1190
        %v1192 = vsel %vm1182, %v1143, 0.0
        %v1193 = vadd.f32 %v1191, %v1192
        %v1194 = vsel %vm1182, %v1144, 0.0
        %v1195 = vadd.f32 %v1193, %v1194
        %v1196 = vsel %vm1182, %v1145, 0.0
        %v1197 = vadd.f32 %v1195, %v1196
        %v1198 = vsel %vm1182, %v1146, 0.0
        %v1199 = vadd.f32 %v1197, %v1198
        %v1200 = vsel %vm1182, %v1147, 0.0
        %v1201 = vadd.f32 %v1199, %v1200
        %v1202 = vsel %vm1182, %v1148, 0.0
        %v1203 = vadd.f32 %v1201, %v1202
        %v1204 = vsel %vm1182, %v1149, 0.0
        %v1205 = vadd.f32 %v1203, %v1204
        %v1206 = vsel %vm1182, %v1150, 0.0
        %v1207 = vadd.f32 %v1205, %v1206
        %v1208 = vsel %vm1182, %v1151, 0.0
        %v1209 = vadd.f32 %v1207, %v1208
        %v1210 = vsel %vm1182, %v1152, 0.0
        %v1211 = vadd.f32 %v1209, %v1210
        %v1212 = vsel %vm1182, %v1153, 0.0
        %v1213 = vadd.f32 %v1211, %v1212
        %v1214 = vsel %vm1182, %v1154, 0.0
        %v1215 = vadd.f32 %v1213, %v1214
        %v1216 = vsel %vm1182, %v1155, 0.0
        %v1217 = vadd.f32 %v1215, %v1216
        %v1218 = vsel %vm1182, %v1156, 0.0
        %v1219 = vadd.f32 %v1217, %v1218
        %v1220 = vsel %vm1182, %v1157, 0.0
        %v1221 = vadd.f32 %v1219, %v1220
        %v1222 = vsel %vm1182, %v1158, 0.0
        %v1223 = vadd.f32 %v1221, %v1222
        %v1224 = vsel %vm1182, %v1159, 0.0
        %v1225 = vadd.f32 %v1223, %v1224
        %v1226 = vsel %vm1182, %v1160, 0.0
        %v1227 = vadd.f32 %v1225, %v1226
        %v1228 = vsel %vm1182, %v1161, 0.0
        %v1229 = vadd.f32 %v1227, %v1228
        %v1230 = vsel %vm1182, %v1162, 0.0
        %v1231 = vadd.f32 %v1229, %v1230
        %v1232 = vsel %vm1182, %v1163, 0.0
        %v1233 = vadd.f32 %v1231, %v1232
        %v1234 = vsel %vm1182, %v1164, 0.0
        %v1235 = vadd.f32 %v1233, %v1234
        %v1236 = vsel %vm1182, %v1165, 0.0
        %v1237 = vadd.f32 %v1235, %v1236
        %v1238 = vsel %vm1182, %v1166, 0.0
        %v1239 = vadd.f32 %v1237, %v1238
        %v1240 = vsel %vm1182, %v1167, 0.0
        %v1241 = vadd.f32 %v1239, %v1240
        %v1242 = vsel %vm1182, %v1168, 0.0
        %v1243 = vadd.f32 %v1241, %v1242
        %v1244 = vsel %vm1182, %v1169, 0.0
        %v1245 = vadd.f32 %v1243, %v1244
        %v1246 = vsel %vm1182, %v1170, 0.0
        %v1247 = vadd.f32 %v1245, %v1246
        %v1248 = vsel %vm1182, %v1171, 0.0
        %v1249 = vadd.f32 %v1247, %v1248
        %v1250 = vsel %vm1182, %v1172, 0.0
        %v1251 = vadd.f32 %v1249, %v1250
        %v1252 = vsel %vm1182, %v1173, 0.0
        %v1253 = vadd.f32 %v1251, %v1252
        %v1254 = vrot.slane %v1253, 4
        %v1255 = vadd.f32 %v1253, %v1254
        %v1256 = vrot.slane %v1255, 2
        %v1257 = vadd.f32 %v1255, %v1256
        %v1258 = vrot.slane %v1257, 1
        %v1259 = vadd.f32 %v1257, %v1258
        %v1260 = vadd.f32 %v1181, %v1259
        %vm1261 = vcmask 57344
        %1262 = vst.msk [vmem:[%s211] sm:$0x1] %vm1261, %v1260
        %v1263 = vld [vmem:[%s217] sm:$0x1]
        %v1264 = vmul.f32 %v1138, %v886
        %v1265 = vmul.f32 %v1139, %v887
        %v1266 = vmul.f32 %v1140, %v888
        %v1267 = vmul.f32 %v1141, %v889
        %v1268 = vmul.f32 %v1142, %v890
        %v1269 = vmul.f32 %v1143, %v891
        %v1270 = vmul.f32 %v1144, %v892
        %v1271 = vmul.f32 %v1145, %v893
        %v1272 = vmul.f32 %v1146, %v894
        %v1273 = vmul.f32 %v1147, %v895
        %v1274 = vmul.f32 %v1148, %v896
        %v1275 = vmul.f32 %v1149, %v897
        %v1276 = vmul.f32 %v1150, %v898
        %v1277 = vmul.f32 %v1151, %v899
        %v1278 = vmul.f32 %v1152, %v900
        %v1279 = vmul.f32 %v1153, %v901
        %v1280 = vmul.f32 %v1154, %v902
        %v1281 = vmul.f32 %v1155, %v903
        %v1282 = vmul.f32 %v1156, %v904
        %v1283 = vmul.f32 %v1157, %v905
        %v1284 = vmul.f32 %v1158, %v906
        %v1285 = vmul.f32 %v1159, %v907
        %v1286 = vmul.f32 %v1160, %v908
        %v1287 = vmul.f32 %v1161, %v909
        %v1288 = vmul.f32 %v1162, %v910
        %v1289 = vmul.f32 %v1163, %v911
        %v1290 = vmul.f32 %v1164, %v912
        %v1291 = vmul.f32 %v1165, %v913
        %v1292 = vmul.f32 %v1166, %v914
        %v1293 = vmul.f32 %v1167, %v915
        %v1294 = vmul.f32 %v1168, %v916
        %v1295 = vmul.f32 %v1169, %v917
        %v1296 = vmul.f32 %v1170, %v918
        %v1297 = vmul.f32 %v1171, %v919
        %v1298 = vmul.f32 %v1172, %v920
        %v1299 = vmul.f32 %v1173, %v921
        %v1300 = vsel %vm1182, %v1264, 0.0
        %v1301 = vsel %vm1182, %v1265, 0.0
        %v1302 = vadd.f32 %v1300, %v1301
        %v1303 = vsel %vm1182, %v1266, 0.0
        %v1304 = vadd.f32 %v1302, %v1303
        %v1305 = vsel %vm1182, %v1267, 0.0
        %v1306 = vadd.f32 %v1304, %v1305
        %v1307 = vsel %vm1182, %v1268, 0.0
        %v1308 = vadd.f32 %v1306, %v1307
        %v1309 = vsel %vm1182, %v1269, 0.0
        %v1310 = vadd.f32 %v1308, %v1309
        %v1311 = vsel %vm1182, %v1270, 0.0
        %v1312 = vadd.f32 %v1310, %v1311
        %v1313 = vsel %vm1182, %v1271, 0.0
        %v1314 = vadd.f32 %v1312, %v1313
        %v1315 = vsel %vm1182, %v1272, 0.0
        %v1316 = vadd.f32 %v1314, %v1315
        %v1317 = vsel %vm1182, %v1273, 0.0
        %v1318 = vadd.f32 %v1316, %v1317
        %v1319 = vsel %vm1182, %v1274, 0.0
        %v1320 = vadd.f32 %v1318, %v1319
        %v1321 = vsel %vm1182, %v1275, 0.0
        %v1322 = vadd.f32 %v1320, %v1321
        %v1323 = vsel %vm1182, %v1276, 0.0
        %v1324 = vadd.f32 %v1322, %v1323
        %v1325 = vsel %vm1182, %v1277, 0.0
        %v1326 = vadd.f32 %v1324, %v1325
        %v1327 = vsel %vm1182, %v1278, 0.0
        %v1328 = vadd.f32 %v1326, %v1327
        %v1329 = vsel %vm1182, %v1279, 0.0
        %v1330 = vadd.f32 %v1328, %v1329
        %v1331 = vsel %vm1182, %v1280, 0.0
        %v1332 = vadd.f32 %v1330, %v1331
        %v1333 = vsel %vm1182, %v1281, 0.0
        %v1334 = vadd.f32 %v1332, %v1333
        %v1335 = vsel %vm1182, %v1282, 0.0
        %v1336 = vadd.f32 %v1334, %v1335
        %v1337 = vsel %vm1182, %v1283, 0.0
        %v1338 = vadd.f32 %v1336, %v1337
        %v1339 = vsel %vm1182, %v1284, 0.0
        %v1340 = vadd.f32 %v1338, %v1339
        %v1341 = vsel %vm1182, %v1285, 0.0
        %v1342 = vadd.f32 %v1340, %v1341
        %v1343 = vsel %vm1182, %v1286, 0.0
        %v1344 = vadd.f32 %v1342, %v1343
        %v1345 = vsel %vm1182, %v1287, 0.0
        %v1346 = vadd.f32 %v1344, %v1345
        %v1347 = vsel %vm1182, %v1288, 0.0
        %v1348 = vadd.f32 %v1346, %v1347
        %v1349 = vsel %vm1182, %v1289, 0.0
        %v1350 = vadd.f32 %v1348, %v1349
        %v1351 = vsel %vm1182, %v1290, 0.0
        %v1352 = vadd.f32 %v1350, %v1351
        %v1353 = vsel %vm1182, %v1291, 0.0
        %v1354 = vadd.f32 %v1352, %v1353
        %v1355 = vsel %vm1182, %v1292, 0.0
        %v1356 = vadd.f32 %v1354, %v1355
        %v1357 = vsel %vm1182, %v1293, 0.0
        %v1358 = vadd.f32 %v1356, %v1357
        %v1359 = vsel %vm1182, %v1294, 0.0
        %v1360 = vadd.f32 %v1358, %v1359
        %v1361 = vsel %vm1182, %v1295, 0.0
        %v1362 = vadd.f32 %v1360, %v1361
        %v1363 = vsel %vm1182, %v1296, 0.0
        %v1364 = vadd.f32 %v1362, %v1363
        %v1365 = vsel %vm1182, %v1297, 0.0
        %v1366 = vadd.f32 %v1364, %v1365
        %v1367 = vsel %vm1182, %v1298, 0.0
        %v1368 = vadd.f32 %v1366, %v1367
        %v1369 = vsel %vm1182, %v1299, 0.0
        %v1370 = vadd.f32 %v1368, %v1369
        %v1371 = vrot.slane %v1370, 4
        %v1372 = vadd.f32 %v1370, %v1371
        %v1373 = vrot.slane %v1372, 2
        %v1374 = vadd.f32 %v1372, %v1373
        %v1375 = vrot.slane %v1374, 1
        %v1376 = vadd.f32 %v1374, %v1375
        %v1377 = vadd.f32 %v1263, %v1376
        %1378 = vst.msk [vmem:[%s217] sm:$0x1] %vm1261, %v1377
        %s1379 = sand.u32 %s112, 1
        %s1380 = scalar_lea.sflag [#allocation3], %s1379
        %s1381 = sand.u32 %s112, 1
        %s1382 = scalar_lea.vmem [#allocation2], %s1381
        %s1383 = sand.u32 %s138, 1
        %s1384 = scalar_lea.sflag [#allocation5], %s1383
        %s1385 = sand.u32 %s138, 1
        %s1386 = scalar_lea.vmem [#allocation4], %s1385
        // Predicated region
        $region37: #{tpu_custom_call.1} parent=31 // pred_check
          %p1387 = pneg %p122
        $region38: #{tpu_custom_call.1} parent=31 // pred_check_branch
          %1389 = sbr.rel (%p1387) target = $region40
        $region39: #{tpu_custom_call.1} parent=31 // pred_region
          %1391 = vsyncadd %s1380, 0
          %s1392 = scalar_lea.hbm %s3, %s26
          %s1394 = sshll.u32 %s1382, 4
          %s1395 = int_to_ptr.vmem [resolvable:$true] %s1394
          %s1396 = sshll.u32 %s1392, 4
          %s1397 = int_to_ptr.hbm [resolvable:$true] %s1396
          %1399 = dma.vmem_to_hbm [thread:$0]  %s1395, 16, %s1397, %s1380
        $region40: #{tpu_custom_call.1} parent=31 // pred_fallthru
          _
        // Predicated region
        $region41: #{tpu_custom_call.1} parent=31 // pred_check
          %p1400 = pneg %p148
        $region42: #{tpu_custom_call.1} parent=31 // pred_check_branch
          %1402 = sbr.rel (%p1400) target = $region44
        $region43: #{tpu_custom_call.1} parent=31 // pred_region
          %1404 = vsyncadd %s1384, 0
          %s1405 = scalar_lea.hbm %s4, %s26
          %s1407 = sshll.u32 %s1386, 4
          %s1408 = int_to_ptr.vmem [resolvable:$true] %s1407
          %s1409 = sshll.u32 %s1405, 4
          %s1410 = int_to_ptr.hbm [resolvable:$true] %s1409
          %1412 = dma.vmem_to_hbm [thread:$0]  %s1408, 16, %s1410, %s1384
        $region44: #{tpu_custom_call.1} parent=31 // pred_fallthru
          _
      $region32: #{tpu_custom_call.1} parent=5 // pred_fallthru
        _
      %p1413 = scmp.le.s32.totalorder 2, %s17
      // Predicated region
      $region45: #{tpu_custom_call.1} parent=5 // pred_check
        %p1414 = pneg %p1413
      $region46: #{tpu_custom_call.1} parent=5 // pred_check_branch
        %1416 = sbr.rel (%p1414) target = $region48
      $region47: #{tpu_custom_call.1} parent=5 // pred_region
        %s1417 = ssub.s32 %s17, 2
        // Predicated region
        $region49: #{tpu_custom_call.1} parent=47 // pred_check
          %p1418 = pneg %p128
        $region50: #{tpu_custom_call.1} parent=47 // pred_check_branch
          %1420 = sbr.rel (%p1418) target = $region52
        $region51: #{tpu_custom_call.1} parent=47 // pred_region
          %s1421 = sand.u32 %s113, 1
          %s1422 = scalar_lea.sflag [#allocation3], %s1421
          %s1423 = sand.u32 %s113, 1
          %s1424 = scalar_lea.vmem [#allocation2], %s1423
          %1426 = dma.done %s1422, 16
        $region52: #{tpu_custom_call.1} parent=47 // pred_fallthru
          _
        // Predicated region
        $region53: #{tpu_custom_call.1} parent=47 // pred_check
          %p1427 = pneg %p154
        $region54: #{tpu_custom_call.1} parent=47 // pred_check_branch
          %1429 = sbr.rel (%p1427) target = $region56
        $region55: #{tpu_custom_call.1} parent=47 // pred_region
          %s1430 = sand.u32 %s139, 1
          %s1431 = scalar_lea.sflag [#allocation5], %s1430
          %s1432 = sand.u32 %s139, 1
          %s1433 = scalar_lea.vmem [#allocation4], %s1432
          %1435 = dma.done %s1431, 16
        $region56: #{tpu_custom_call.1} parent=47 // pred_fallthru
          _
      $region48: #{tpu_custom_call.1} parent=5 // pred_fallthru
        _
    $region6: #{tpu_custom_call.1} parent=1 // loop_footer
      %s21 = sadd.s32 1, %s17
    $region7: #{tpu_custom_call.1} parent=1 // loop_footer_branch
      %16 = sbr.rel target = $region3
    $region8: #{tpu_custom_call.1} parent=1 // loop_exit
      _
    %1436 = vsyncpa [#allocation3], 1
    %s1437 = scalar_lea.sflag [#allocation3], 1
    %1438 = vsyncpa %s1437, 1
    %1439 = vsyncpa [#allocation5], 1
    %s1440 = scalar_lea.sflag [#allocation5], 1
    %1441 = vsyncpa %s1440, 1

</llo_original>
